<compile_context>
chip_gen: v7x
topology: tpu7x:2x2x1
jax: 0.10.0
libtpu: 0.0.40
codegen_flags: <defaults>
</compile_context>

<pallas_src>
import jax
import jax.numpy as jnp
import numpy as np
from jax.experimental import pallas as pl
from jax.experimental.pallas import tpu as pltpu  # noqa: F401  (TPU backend)

EPSILON = 1e-5

# ------------------------- problem sizes (small) ----------------------------
N = 8            # batch
OBS = 16         # obs_size
A = 8            # action_size
EMB = 2 * A      # obs_embedding_size
HID = 128        # obs_embedding_hidden_layer_size
NLAYERS = 2      # BijectiveTransform layer_num
A2 = 2 * A       # fused scale+translate width
LANES = 128      # lane width of the packed parameter slab

# ---- row offsets inside the single packed parameter slab (f32, 128 lanes) ----
R_EW0 = 0                          # (OBS, HID)        embedding layer-0 weight
R_EW1 = R_EW0 + OBS                # (HID, HID)        embedding layer-1 weight
R_EW2 = R_EW1 + HID                # (HID, EMB)        embedding output weight
R_WC = R_EW2 + HID                 # (EMB, NLAYERS*A2) cond-part of all coupling W0s
R_W0X = R_WC + EMB                 # (NLAYERS*A, A2)   x-part of fused coupling W0s
R_W1 = R_W0X + NLAYERS * A         # (NLAYERS*A2, A2)  block-diag fused coupling W1s
R_EB0 = R_W1 + NLAYERS * A2        # (1, HID)
R_EB1 = R_EB0 + 1                  # (1, HID)
R_EB2 = R_EB1 + 1                  # (1, EMB)
R_B0A = R_EB2 + 1                  # (1, NLAYERS*A2)   fused first-layer coupling biases
R_B1 = R_B0A + 1                   # (NLAYERS, A2)     fused second-layer coupling biases
R_MASK = R_B1 + NLAYERS            # (NLAYERS, A)      masks (stored in generate order)
R_SMUL = R_MASK + NLAYERS          # (NLAYERS, A)      ssc * (1 - mask)
R_SCM = R_SMUL + NLAYERS           # (1, A)            action scaler midpoint
R_SCW = R_SCM + 1                  # (1, A)            action scaler half-width
NROWS = ((R_SCW + 1 + 7) // 8) * 8  # pad rows to a multiple of 8


# ------------------------------- kernel -------------------------------------
def policy_kernel(hh_ref, obs_ref, p_ref, out_ref):
    f32 = jnp.float32

    # ---- obs embedding MLP: obs -> relu -> relu -> EMB ----
    obs = obs_ref[...]
    e = jnp.maximum(
        jnp.dot(obs, p_ref[R_EW0:R_EW0 + OBS, :], preferred_element_type=f32)
        + p_ref[R_EB0:R_EB0 + 1, :], 0.0)
    e = jnp.maximum(
        jnp.dot(e, p_ref[R_EW1:R_EW1 + HID, :], preferred_element_type=f32)
        + p_ref[R_EB1:R_EB1 + 1, :], 0.0)
    cond = (jnp.dot(e, p_ref[R_EW2:R_EW2 + HID, 0:EMB], preferred_element_type=f32)
            + p_ref[R_EB2:R_EB2 + 1, 0:EMB])                               # (N, EMB)

    # All cond contributions (both coupling layers x fused scale/translate nets)
    # in ONE matmul, with the fused first-layer biases pre-added.
    # Lanes [j*A2:(j+1)*A2] belong to the j-th *processed* (reversed) layer.
    cc = (jnp.dot(cond, p_ref[R_WC:R_WC + EMB, 0:NLAYERS * A2],
                  preferred_element_type=f32)
          + p_ref[R_B0A:R_B0A + 1, 0:NLAYERS * A2])                        # (N, 2*A2)

    # ---- BijectiveTransform.generate(hh, cond): coupling layers ----
    x = hh_ref[...]                                                        # (N, A)
    log_det = jnp.zeros((x.shape[0], 1), f32)

    for j in range(NLAYERS):          # layers are pre-packed in generate (reversed) order
        mask = p_ref[R_MASK + j:R_MASK + j + 1, 0:A]                       # (1, A)
        smul = p_ref[R_SMUL + j:R_SMUL + j + 1, 0:A]                       # ssc*(1-mask)
        w0x = p_ref[R_W0X + j * A:R_W0X + (j + 1) * A, 0:A2]               # (A, 2A)
        w1 = p_ref[R_W1 + j * A2:R_W1 + (j + 1) * A2, 0:A2]                # (2A, 2A)
        b1 = p_ref[R_B1 + j:R_B1 + j + 1, 0:A2]                            # (1, 2A)

        mx = mask * x
        h1 = jnp.maximum(jnp.dot(mx, w0x, preferred_element_type=f32)
                         + cc[:, j * A2:(j + 1) * A2], 0.0)                # (N, 2A)
        h2 = jnp.dot(h1, w1, preferred_element_type=f32) + b1              # (N, 2A)

        s = jnp.tanh(h2[:, 0:A]) * smul          # tanh * output_scale * (1-mask)
        t = h2[:, A:A2] * (1.0 - mask)           # translate net, masked

        x = mx + ((1.0 - mask) * x - t) * jnp.exp(-s)
        log_det = log_det + jnp.sum(s, axis=1, keepdims=True)   # == -sum(-s)

    # ---- action Scaler: a = m + w*tanh(x), minus its log-det ----
    scm = p_ref[R_SCM:R_SCM + 1, 0:A]
    scw = p_ref[R_SCW:R_SCW + 1, 0:A]
    u = jnp.tanh(x)
    a = scm + scw * u
    log_det = log_det - jnp.sum(jnp.log(scw * (1.0 - u * u) + EPSILON),
                                axis=1, keepdims=True)

    # single packed output: action in lanes [0:A], log_det broadcast in [A:2A]
    out_ref[...] = jnp.concatenate(
        [a, jnp.broadcast_to(log_det, (a.shape[0], A))], axis=1)


# ------------------------------- wrapper -------------------------------------
def policy_forward(hh, obs, packed_params):
    n = hh.shape[0]
    out = pl.pallas_call(
        policy_kernel,
        out_shape=jax.ShapeDtypeStruct((n, A2), jnp.float32),
    )(hh, obs, packed_params)
    return out[:, :A], out[:, A]


# --------------------------- parameter construction ---------------------------
def _xavier(key, fan_in, fan_out):
    limit = float(np.sqrt(6.0 / (fan_in + fan_out)))
    return jax.random.uniform(key, (fan_in, fan_out), jnp.float32, -limit, limit)


def make_params(key):
    """Raw (PyTorch-layout) parameters. Biases / output_scale are randomized
    (module init would zero them) so the packed/folded kernel path is fully
    exercised by the correctness check."""
    ks = jax.random.split(key, 20)
    p = {}
    p["eW0"] = _xavier(ks[0], OBS, HID)
    p["eb0"] = 0.1 * jax.random.normal(ks[11], (1, HID), jnp.float32)
    p["eW1"] = _xavier(ks[1], HID, HID)
    p["eb1"] = 0.1 * jax.random.normal(ks[12], (1, HID), jnp.float32)
    p["eW2"] = _xavier(ks[2], HID, EMB)
    p["eb2"] = 0.1 * jax.random.normal(ks[13], (1, EMB), jnp.float32)

    IN = A + EMB
    p["sW0"] = jnp.stack([_xavier(ks[3], IN, A), _xavier(ks[4], IN, A)])
    p["sb0"] = 0.1 * jax.random.normal(ks[14], (NLAYERS, A), jnp.float32)
    p["sW1"] = jnp.stack([_xavier(ks[5], A, A), _xavier(ks[6], A, A)])
    p["sb1"] = 0.1 * jax.random.normal(ks[15], (NLAYERS, A), jnp.float32)
    p["ssc"] = jax.random.uniform(ks[16], (NLAYERS, 1), jnp.float32, 0.5, 1.5)
    p["tW0"] = jnp.stack([_xavier(ks[7], IN, A), _xavier(ks[8], IN, A)])
    p["tb0"] = 0.1 * jax.random.normal(ks[17], (NLAYERS, A), jnp.float32)
    p["tW1"] = jnp.stack([_xavier(ks[9], A, A), _xavier(ks[10], A, A)])
    p["tb1"] = 0.1 * jax.random.normal(ks[18], (NLAYERS, A), jnp.float32)

    m = jnp.concatenate([jnp.ones(A // 2), jnp.zeros(A - A // 2)]).astype(jnp.float32)
    p["masks"] = jnp.stack([m, 1.0 - m])

    action_low = -2.0 * np.ones(A, np.float32)
    action_high = 2.0 * np.ones(A, np.float32)
    p["scm"] = jnp.asarray((action_low + action_high) / 2.0).reshape(1, A)
    p["scw"] = jnp.asarray((action_high - action_low) / 2.0).reshape(1, A)
    return p


def pack_params(p):
    """Pack + restructure all parameters into one (NROWS, 128) f32 slab.
    Coupling layers are stored in generate() (reversed) processing order; the
    scale/translate nets of each layer are fused (W0 concat / W1 block-diag)."""
    f32 = jnp.float32

    def pad_lanes(x):
        x = jnp.asarray(x, f32)
        if x.ndim == 1:
            x = x[None, :]
        return jnp.pad(x, ((0, 0), (0, LANES - x.shape[1])))

    wc2, w0x, w1, b0, b1, msk, smul = [], [], [], [], [], [], []
    zz = jnp.zeros((A, A), f32)
    for i in reversed(range(NLAYERS)):                 # generate() order
        sW0, tW0 = p["sW0"][i], p["tW0"][i]            # (A+EMB, A)
        sW1, tW1 = p["sW1"][i], p["tW1"][i]            # (A, A)
        wc2.append(jnp.concatenate([sW0[A:], tW0[A:]], axis=1))       # cond part (EMB, 2A)
        w0x.append(jnp.concatenate([sW0[:A], tW0[:A]], axis=1))       # x part    (A, 2A)
        w1.append(jnp.concatenate(
            [jnp.concatenate([sW1, zz], axis=1),
             jnp.concatenate([zz, tW1], axis=1)], axis=0))            # block-diag (2A, 2A)
        b0.append(jnp.concatenate([p["sb0"][i], p["tb0"][i]])[None, :])
        b1.append(jnp.concatenate([p["sb1"][i], p["tb1"][i]])[None, :])
        msk.append(p["masks"][i][None, :])
        smul.append((p["ssc"][i] * (1.0 - p["masks"][i]))[None, :])

    rows = [
        pad_lanes(p["eW0"]),                            # R_EW0
        pad_lanes(p["eW1"]),                            # R_EW1
        pad_lanes(p["eW2"]),                            # R_EW2
        pad_lanes(jnp.concatenate(wc2, axis=1)),        # R_WC   (EMB, NLAYERS*2A)
        pad_lanes(jnp.concatenate(w0x, axis=0)),        # R_W0X  (NLAYERS*A, 2A)
        pad_lanes(jnp.concatenate(w1, axis=0)),         # R_W1   (NLAYERS*2A, 2A)
        pad_lanes(p["eb0"]),                            # R_EB0
        pad_lanes(p["eb1"]),                            # R_EB1
        pad_lanes(p["eb2"]),                            # R_EB2
        pad_lanes(jnp.concatenate(b0, axis=1)),         # R_B0A  (1, NLAYERS*2A)
        pad_lanes(jnp.concatenate(b1, axis=0)),         # R_B1   (NLAYERS, 2A)
        pad_lanes(jnp.concatenate(msk, axis=0)),        # R_MASK (NLAYERS, A)
        pad_lanes(jnp.concatenate(smul, axis=0)),       # R_SMUL (NLAYERS, A)
        pad_lanes(p["scm"]),                            # R_SCM
        pad_lanes(p["scw"]),                            # R_SCW
    ]
    packed = jnp.concatenate(rows, axis=0)
    return jnp.pad(packed, ((0, NROWS - packed.shape[0]), (0, 0)))


# ------------------------------ pure-JAX reference ----------------------------
def policy_forward_ref(hh, obs, p):
    e = jax.nn.relu(obs @ p["eW0"] + p["eb0"])
    e = jax.nn.relu(e @ p["eW1"] + p["eb1"])
    cond = e @ p["eW2"] + p["eb2"]

    x = hh
    log_det = jnp.zeros((hh.shape[0],), jnp.float32)
    for i in reversed(range(NLAYERS)):
        mask = p["masks"][i][None, :]
        x_ = jnp.concatenate([mask * x, cond], axis=1)
        s = jax.nn.relu(x_ @ p["sW0"][i] + p["sb0"][i][None, :])
        s = jnp.tanh(s @ p["sW1"][i] + p["sb1"][i][None, :]) * p["ssc"][i]
        s = s * (1.0 - mask)
        t = jax.nn.relu(x_ @ p["tW0"][i] + p["tb0"][i][None, :])
        t = (t @ p["tW1"][i] + p["tb1"][i][None, :]) * (1.0 - mask)
        x = mask * x + ((1.0 - mask) * x - t) * jnp.exp(-s)
        log_det = log_det - jnp.sum(-s, axis=1)
    u = jnp.tanh(x)
    a = p["scm"] + p["scw"] * u
    log_det = log_det - jnp.sum(jnp.log(p["scw"] * (1.0 - u * u) + EPSILON), axis=1)
    return a, log_det


if __name__ == "__main__":
    key = jax.random.PRNGKey(0)
    k_par, k_hh, k_obs = jax.random.split(key, 3)
    params = make_params(k_par)
    packed = pack_params(params)
    hh = jax.random.normal(k_hh, (N, A), jnp.float32)
    obs = jax.random.normal(k_obs, (N, OBS), jnp.float32)

    h, log_det = policy_forward(hh, obs, packed)
    jax.block_until_ready((h, log_det))

    h_ref, ld_ref = policy_forward_ref(hh, obs, params)
    assert jnp.allclose(h, h_ref, atol=2e-3, rtol=2e-3), "h mismatch"
    assert jnp.allclose(log_det, ld_ref, atol=2e-3, rtol=2e-3), "log_det mismatch"

    print("KERNEL_OK")
</pallas_src>

<mosaic_0001>
module attributes {stable_mosaic.version = 11 : i64} {
  func.func @policy_kernel(%arg0: memref<8x8xf32, #tpu.memory_space<vmem>>, %arg1: memref<8x16xf32, #tpu.memory_space<vmem>>, %arg2: memref<352x128xf32, #tpu.memory_space<vmem>>, %arg3: memref<8x16xf32, #tpu.memory_space<vmem>>) attributes {dimension_semantics = [], scalar_prefetch = 0 : i64, scratch_operands = 0 : i64, tpu.core_type = #tpu.core_type<tc>} {
    %c0 = arith.constant 0 : index
    %c0_0 = arith.constant 0 : index
    %0 = vector.load %arg1[%c0, %c0_0] : memref<8x16xf32, #tpu.memory_space<vmem>>, vector<8x16xf32>
    %c0_1 = arith.constant 0 : index
    %c0_2 = arith.constant 0 : index
    %1 = vector.load %arg2[%c0_1, %c0_2] : memref<352x128xf32, #tpu.memory_space<vmem>>, vector<16x128xf32>
    %cst = arith.constant dense<0.000000e+00> : vector<8x128xf32>
    %2 = tpu.matmul %0, %1, %cst {dimension_numbers = #tpu.dot_dimension_numbers<[1], [0], [0], [1], [0, 0, 1, 1], [], []>} : vector<8x16xf32>, vector<16x128xf32>, vector<8x128xf32> -> vector<8x128xf32>
    %c336 = arith.constant 336 : index
    %c0_3 = arith.constant 0 : index
    %3 = vector.load %arg2[%c336, %c0_3] : memref<352x128xf32, #tpu.memory_space<vmem>>, vector<1x128xf32>
    %4 = vector.broadcast %3 : vector<1x128xf32> to vector<8x128xf32>
    %5 = arith.addf %2, %4 : vector<8x128xf32>
    %cst_4 = arith.constant 0.000000e+00 : f32
    %6 = vector.broadcast %cst_4 : f32 to vector<8x128xf32>
    %7 = arith.maximumf %5, %6 : vector<8x128xf32>
    %c16 = arith.constant 16 : index
    %c0_5 = arith.constant 0 : index
    %8 = vector.load %arg2[%c16, %c0_5] : memref<352x128xf32, #tpu.memory_space<vmem>>, vector<128x128xf32>
    %cst_6 = arith.constant dense<0.000000e+00> : vector<8x128xf32>
    %9 = tpu.matmul %7, %8, %cst_6 {dimension_numbers = #tpu.dot_dimension_numbers<[1], [0], [0], [1], [0, 0, 1, 1], [], []>} : vector<8x128xf32>, vector<128x128xf32>, vector<8x128xf32> -> vector<8x128xf32>
    %c337 = arith.constant 337 : index
    %c0_7 = arith.constant 0 : index
    %10 = vector.load %arg2[%c337, %c0_7] : memref<352x128xf32, #tpu.memory_space<vmem>>, vector<1x128xf32>
    %11 = vector.broadcast %10 : vector<1x128xf32> to vector<8x128xf32>
    %12 = arith.addf %9, %11 : vector<8x128xf32>
    %cst_8 = arith.constant 0.000000e+00 : f32
    %13 = vector.broadcast %cst_8 : f32 to vector<8x128xf32>
    %14 = arith.maximumf %12, %13 : vector<8x128xf32>
    %c144 = arith.constant 144 : index
    %c0_9 = arith.constant 0 : index
    %15 = vector.load %arg2[%c144, %c0_9] : memref<352x128xf32, #tpu.memory_space<vmem>>, vector<128x16xf32>
    %cst_10 = arith.constant dense<0.000000e+00> : vector<8x16xf32>
    %16 = tpu.matmul %14, %15, %cst_10 {dimension_numbers = #tpu.dot_dimension_numbers<[1], [0], [0], [1], [0, 0, 1, 1], [], []>} : vector<8x128xf32>, vector<128x16xf32>, vector<8x16xf32> -> vector<8x16xf32>
    %c338 = arith.constant 338 : index
    %c0_11 = arith.constant 0 : index
    %17 = vector.load %arg2[%c338, %c0_11] : memref<352x128xf32, #tpu.memory_space<vmem>>, vector<1x16xf32>
    %18 = vector.broadcast %17 : vector<1x16xf32> to vector<8x16xf32>
    %19 = arith.addf %16, %18 : vector<8x16xf32>
    %c272 = arith.constant 272 : index
    %c0_12 = arith.constant 0 : index
    %20 = vector.load %arg2[%c272, %c0_12] : memref<352x128xf32, #tpu.memory_space<vmem>>, vector<16x32xf32>
    %cst_13 = arith.constant dense<0.000000e+00> : vector<8x32xf32>
    %21 = tpu.matmul %19, %20, %cst_13 {dimension_numbers = #tpu.dot_dimension_numbers<[1], [0], [0], [1], [0, 0, 1, 1], [], []>} : vector<8x16xf32>, vector<16x32xf32>, vector<8x32xf32> -> vector<8x32xf32>
    %c339 = arith.constant 339 : index
    %c0_14 = arith.constant 0 : index
    %22 = vector.load %arg2[%c339, %c0_14] : memref<352x128xf32, #tpu.memory_space<vmem>>, vector<1x32xf32>
    %23 = vector.broadcast %22 : vector<1x32xf32> to vector<8x32xf32>
    %24 = arith.addf %21, %23 : vector<8x32xf32>
    %c0_15 = arith.constant 0 : index
    %c0_16 = arith.constant 0 : index
    %25 = vector.load %arg0[%c0_15, %c0_16] : memref<8x8xf32, #tpu.memory_space<vmem>>, vector<8x8xf32>
    %cst_17 = arith.constant 0.000000e+00 : f32
    %26 = vector.broadcast %cst_17 : f32 to vector<8x1xf32>
    %c342 = arith.constant 342 : index
    %c0_18 = arith.constant 0 : index
    %27 = vector.load %arg2[%c342, %c0_18] : memref<352x128xf32, #tpu.memory_space<vmem>>, vector<1x8xf32>
    %c344 = arith.constant 344 : index
    %c0_19 = arith.constant 0 : index
    %28 = vector.load %arg2[%c344, %c0_19] : memref<352x128xf32, #tpu.memory_space<vmem>>, vector<1x8xf32>
    %c288 = arith.constant 288 : index
    %c0_20 = arith.constant 0 : index
    %29 = vector.load %arg2[%c288, %c0_20] : memref<352x128xf32, #tpu.memory_space<vmem>>, vector<8x16xf32>
    %c304 = arith.constant 304 : index
    %c0_21 = arith.constant 0 : index
    %30 = vector.load %arg2[%c304, %c0_21] : memref<352x128xf32, #tpu.memory_space<vmem>>, vector<16x16xf32>
    %c340 = arith.constant 340 : index
    %c0_22 = arith.constant 0 : index
    %31 = vector.load %arg2[%c340, %c0_22] : memref<352x128xf32, #tpu.memory_space<vmem>>, vector<1x16xf32>
    %32 = vector.broadcast %27 : vector<1x8xf32> to vector<8x8xf32>
    %33 = arith.mulf %32, %25 : vector<8x8xf32>
    %cst_23 = arith.constant dense<0.000000e+00> : vector<8x16xf32>
    %34 = tpu.matmul %33, %29, %cst_23 {dimension_numbers = #tpu.dot_dimension_numbers<[1], [0], [0], [1], [0, 0, 1, 1], [], []>} : vector<8x8xf32>, vector<8x16xf32>, vector<8x16xf32> -> vector<8x16xf32>
    %35 = vector.extract_strided_slice %24 {offsets = [0, 0], sizes = [8, 16], strides = [1, 1]} : vector<8x32xf32> to vector<8x16xf32>
    %36 = arith.addf %34, %35 : vector<8x16xf32>
    %cst_24 = arith.constant 0.000000e+00 : f32
    %37 = vector.broadcast %cst_24 : f32 to vector<8x16xf32>
    %38 = arith.maximumf %36, %37 : vector<8x16xf32>
    %cst_25 = arith.constant dense<0.000000e+00> : vector<8x16xf32>
    %39 = tpu.matmul %38, %30, %cst_25 {dimension_numbers = #tpu.dot_dimension_numbers<[1], [0], [0], [1], [0, 0, 1, 1], [], []>} : vector<8x16xf32>, vector<16x16xf32>, vector<8x16xf32> -> vector<8x16xf32>
    %40 = vector.broadcast %31 : vector<1x16xf32> to vector<8x16xf32>
    %41 = arith.addf %39, %40 : vector<8x16xf32>
    %42 = vector.extract_strided_slice %41 {offsets = [0, 0], sizes = [8, 8], strides = [1, 1]} : vector<8x16xf32> to vector<8x8xf32>
    %43 = math.tanh %42 : vector<8x8xf32>
    %44 = vector.broadcast %28 : vector<1x8xf32> to vector<8x8xf32>
    %45 = arith.mulf %43, %44 : vector<8x8xf32>
    %46 = vector.extract_strided_slice %41 {offsets = [0, 8], sizes = [8, 8], strides = [1, 1]} : vector<8x16xf32> to vector<8x8xf32>
    %cst_26 = arith.constant 1.000000e+00 : f32
    %47 = vector.broadcast %cst_26 : f32 to vector<1x8xf32>
    %48 = arith.subf %47, %27 : vector<1x8xf32>
    %49 = vector.broadcast %48 : vector<1x8xf32> to vector<8x8xf32>
    %50 = arith.mulf %46, %49 : vector<8x8xf32>
    %cst_27 = arith.constant 1.000000e+00 : f32
    %51 = vector.broadcast %cst_27 : f32 to vector<1x8xf32>
    %52 = arith.subf %51, %27 : vector<1x8xf32>
    %53 = vector.broadcast %52 : vector<1x8xf32> to vector<8x8xf32>
    %54 = arith.mulf %53, %25 : vector<8x8xf32>
    %55 = arith.subf %54, %50 : vector<8x8xf32>
    %cst_28 = arith.constant 0.000000e+00 : f32
    %56 = vector.broadcast %cst_28 : f32 to vector<8x8xf32>
    %57 = arith.subf %56, %45 : vector<8x8xf32>
    %58 = math.exp %57 : vector<8x8xf32>
    %59 = arith.mulf %55, %58 : vector<8x8xf32>
    %60 = arith.addf %33, %59 : vector<8x8xf32>
    %cst_29 = arith.constant dense<0.000000e+00> : vector<8xf32>
    %61 = vector.multi_reduction <add>, %45, %cst_29 [1] : vector<8x8xf32> to vector<8xf32>
    %62 = vector.shape_cast %61 : vector<8xf32> to vector<8x1xf32>
    %63 = arith.addf %26, %62 : vector<8x1xf32>
    %c343 = arith.constant 343 : index
    %c0_30 = arith.constant 0 : index
    %64 = vector.load %arg2[%c343, %c0_30] : memref<352x128xf32, #tpu.memory_space<vmem>>, vector<1x8xf32>
    %c345 = arith.constant 345 : index
    %c0_31 = arith.constant 0 : index
    %65 = vector.load %arg2[%c345, %c0_31] : memref<352x128xf32, #tpu.memory_space<vmem>>, vector<1x8xf32>
    %c296 = arith.constant 296 : index
    %c0_32 = arith.constant 0 : index
    %66 = vector.load %arg2[%c296, %c0_32] : memref<352x128xf32, #tpu.memory_space<vmem>>, vector<8x16xf32>
    %c320 = arith.constant 320 : index
    %c0_33 = arith.constant 0 : index
    %67 = vector.load %arg2[%c320, %c0_33] : memref<352x128xf32, #tpu.memory_space<vmem>>, vector<16x16xf32>
    %c341 = arith.constant 341 : index
    %c0_34 = arith.constant 0 : index
    %68 = vector.load %arg2[%c341, %c0_34] : memref<352x128xf32, #tpu.memory_space<vmem>>, vector<1x16xf32>
    %69 = vector.broadcast %64 : vector<1x8xf32> to vector<8x8xf32>
    %70 = arith.mulf %69, %60 : vector<8x8xf32>
    %cst_35 = arith.constant dense<0.000000e+00> : vector<8x16xf32>
    %71 = tpu.matmul %70, %66, %cst_35 {dimension_numbers = #tpu.dot_dimension_numbers<[1], [0], [0], [1], [0, 0, 1, 1], [], []>} : vector<8x8xf32>, vector<8x16xf32>, vector<8x16xf32> -> vector<8x16xf32>
    %72 = vector.extract_strided_slice %24 {offsets = [0, 16], sizes = [8, 16], strides = [1, 1]} : vector<8x32xf32> to vector<8x16xf32>
    %73 = arith.addf %71, %72 : vector<8x16xf32>
    %cst_36 = arith.constant 0.000000e+00 : f32
    %74 = vector.broadcast %cst_36 : f32 to vector<8x16xf32>
    %75 = arith.maximumf %73, %74 : vector<8x16xf32>
    %cst_37 = arith.constant dense<0.000000e+00> : vector<8x16xf32>
    %76 = tpu.matmul %75, %67, %cst_37 {dimension_numbers = #tpu.dot_dimension_numbers<[1], [0], [0], [1], [0, 0, 1, 1], [], []>} : vector<8x16xf32>, vector<16x16xf32>, vector<8x16xf32> -> vector<8x16xf32>
    %77 = vector.broadcast %68 : vector<1x16xf32> to vector<8x16xf32>
    %78 = arith.addf %76, %77 : vector<8x16xf32>
    %79 = vector.extract_strided_slice %78 {offsets = [0, 0], sizes = [8, 8], strides = [1, 1]} : vector<8x16xf32> to vector<8x8xf32>
    %80 = math.tanh %79 : vector<8x8xf32>
    %81 = vector.broadcast %65 : vector<1x8xf32> to vector<8x8xf32>
    %82 = arith.mulf %80, %81 : vector<8x8xf32>
    %83 = vector.extract_strided_slice %78 {offsets = [0, 8], sizes = [8, 8], strides = [1, 1]} : vector<8x16xf32> to vector<8x8xf32>
    %cst_38 = arith.constant 1.000000e+00 : f32
    %84 = vector.broadcast %cst_38 : f32 to vector<1x8xf32>
    %85 = arith.subf %84, %64 : vector<1x8xf32>
    %86 = vector.broadcast %85 : vector<1x8xf32> to vector<8x8xf32>
    %87 = arith.mulf %83, %86 : vector<8x8xf32>
    %cst_39 = arith.constant 1.000000e+00 : f32
    %88 = vector.broadcast %cst_39 : f32 to vector<1x8xf32>
    %89 = arith.subf %88, %64 : vector<1x8xf32>
    %90 = vector.broadcast %89 : vector<1x8xf32> to vector<8x8xf32>
    %91 = arith.mulf %90, %60 : vector<8x8xf32>
    %92 = arith.subf %91, %87 : vector<8x8xf32>
    %cst_40 = arith.constant 0.000000e+00 : f32
    %93 = vector.broadcast %cst_40 : f32 to vector<8x8xf32>
    %94 = arith.subf %93, %82 : vector<8x8xf32>
    %95 = math.exp %94 : vector<8x8xf32>
    %96 = arith.mulf %92, %95 : vector<8x8xf32>
    %97 = arith.addf %70, %96 : vector<8x8xf32>
    %cst_41 = arith.constant dense<0.000000e+00> : vector<8xf32>
    %98 = vector.multi_reduction <add>, %82, %cst_41 [1] : vector<8x8xf32> to vector<8xf32>
    %99 = vector.shape_cast %98 : vector<8xf32> to vector<8x1xf32>
    %100 = arith.addf %63, %99 : vector<8x1xf32>
    %c346 = arith.constant 346 : index
    %c0_42 = arith.constant 0 : index
    %101 = vector.load %arg2[%c346, %c0_42] : memref<352x128xf32, #tpu.memory_space<vmem>>, vector<1x8xf32>
    %c347 = arith.constant 347 : index
    %c0_43 = arith.constant 0 : index
    %102 = vector.load %arg2[%c347, %c0_43] : memref<352x128xf32, #tpu.memory_space<vmem>>, vector<1x8xf32>
    %103 = math.tanh %97 : vector<8x8xf32>
    %104 = vector.broadcast %102 : vector<1x8xf32> to vector<8x8xf32>
    %105 = arith.mulf %104, %103 : vector<8x8xf32>
    %106 = vector.broadcast %101 : vector<1x8xf32> to vector<8x8xf32>
    %107 = arith.addf %106, %105 : vector<8x8xf32>
    %108 = arith.mulf %103, %103 : vector<8x8xf32>
    %cst_44 = arith.constant 1.000000e+00 : f32
    %109 = vector.broadcast %cst_44 : f32 to vector<8x8xf32>
    %110 = arith.subf %109, %108 : vector<8x8xf32>
    %111 = vector.broadcast %102 : vector<1x8xf32> to vector<8x8xf32>
    %112 = arith.mulf %111, %110 : vector<8x8xf32>
    %cst_45 = arith.constant 9.99999974E-6 : f32
    %113 = vector.broadcast %cst_45 : f32 to vector<8x8xf32>
    %114 = arith.addf %112, %113 : vector<8x8xf32>
    %115 = math.log %114 : vector<8x8xf32>
    %cst_46 = arith.constant dense<0.000000e+00> : vector<8xf32>
    %116 = vector.multi_reduction <add>, %115, %cst_46 [1] : vector<8x8xf32> to vector<8xf32>
    %117 = vector.shape_cast %116 : vector<8xf32> to vector<8x1xf32>
    %118 = arith.subf %100, %117 : vector<8x1xf32>
    %119 = vector.shape_cast %118 : vector<8x1xf32> to vector<8x1xf32>
    %120 = vector.broadcast %119 : vector<8x1xf32> to vector<8x8xf32>
    %121 = tpu.concatenate %107, %120 in 1 : vector<8x8xf32>, vector<8x8xf32> -> vector<8x16xf32>
    %c0_47 = arith.constant 0 : index
    %c0_48 = arith.constant 0 : index
    %122 = vector.load %arg3[%c0_47, %c0_48] : memref<8x16xf32, #tpu.memory_space<vmem>>, vector<8x16xf32>
    tpu.vector_store %arg3[%c0_47, %c0_48], %121 {strides = array<i32>} : memref<8x16xf32, #tpu.memory_space<vmem>>, vector<8x16xf32>,
    return
  }
}

</mosaic_0001>

<llo_original>
// kernel: tpu_custom_call.1
$region0: #{tpu_custom_call.1}
  #allocation0 [shape = 'u32[]', space=smem, size = 0x4, offset = 0x4, fixed_abs, tag = 'smem constant byte address 0x4 - core index']
  #allocation1 [shape = 'u32[144,128]{1,0:T(1,128)}', space=vmem, size = 0x12000, scoped, tag = 'internal scratch']
  %s0 = inlined_call_operand.hbm [shape: f32[8,8], index: 0, kind: input, shape index: {}]
  %s1 = inlined_call_operand.hbm [shape: f32[8,16], index: 1, kind: input, shape index: {}]
  %s2 = inlined_call_operand.hbm [shape: f32[352,128], index: 2, kind: input, shape index: {}]
  %s3 = inlined_call_operand.hbm [shape: f32[8,16], index: 3, kind: output, shape index: {}]
  %s4 = sld [smem:[#allocation0]]
  $region34: #{tpu_custom_call.1} parent=0
    _
  %s6 = ssub.s32 1, %s4
  %s7 = scalar_select 0, %s6, %s4
  $region1: #{tpu_custom_call.1} parent=0
    #allocation2 [shape = 'u8[4096]{0}', space=vmem, size = 0x1000, scoped, tag = 'input window, operand 0, single buffered']
    #allocation3 [shape = 's32[1]{0}', space=sflag, size = 0x4, scoped, tag = 'scoped memory for tpu_custom_call.1']
    #allocation4 [shape = 's32[1]{0}', space=sflag, size = 0x4, scoped, tag = 'scoped memory for tpu_custom_call.1']
    #allocation5 [shape = 'u8[4096]{0}', space=vmem, size = 0x1000, scoped, tag = 'input window, operand 1, single buffered']
    #allocation6 [shape = 's32[1]{0}', space=sflag, size = 0x4, scoped, tag = 'scoped memory for tpu_custom_call.1']
    #allocation7 [shape = 'u8[180224]{0}', space=vmem, size = 0x2c000, scoped, tag = 'input window, operand 2, single buffered']
    #allocation8 [shape = 'u8[4096]{0}', space=vmem, size = 0x1000, scoped, tag = 'output window, operand 0, single buffered']
    %8 = vsyncpa [#allocation3], 0
    %9 = vsyncpa [#allocation6], 0
    %10 = vsyncpa [#allocation4], 0
    // Predicated region
    $region2: #{tpu_custom_call.1} parent=1 // pred_check
      _
    $region3: #{tpu_custom_call.1} parent=1 // pred_check_branch
      %12 = sbr.rel (0) target = $region5
    $region4: #{tpu_custom_call.1} parent=1 // pred_region
      %s14 = ssub.s32 128, 128
      %15 = vsyncadd [#allocation3], %s14
      %s17 = sshll.u32 [#allocation2], 4
      %s18 = int_to_ptr.vmem [resolvable:$true] %s17
      %20 = dma.hbm_to_vmem [thread:$0]  %s0, 128, %s18, [#allocation3]
    $region5: #{tpu_custom_call.1} parent=1 // pred_fallthru
      _
    // Predicated region
    $region6: #{tpu_custom_call.1} parent=1 // pred_check
      _
    $region7: #{tpu_custom_call.1} parent=1 // pred_check_branch
      %22 = sbr.rel (0) target = $region9
    $region8: #{tpu_custom_call.1} parent=1 // pred_region
      %s24 = ssub.s32 128, 128
      %25 = vsyncadd [#allocation6], %s24
      %s27 = sshll.u32 [#allocation5], 4
      %s28 = int_to_ptr.vmem [resolvable:$true] %s27
      %30 = dma.hbm_to_vmem [thread:$0]  %s1, 128, %s28, [#allocation6]
    $region9: #{tpu_custom_call.1} parent=1 // pred_fallthru
      _
    // Predicated region
    $region10: #{tpu_custom_call.1} parent=1 // pred_check
      _
    $region11: #{tpu_custom_call.1} parent=1 // pred_check_branch
      %32 = sbr.rel (0) target = $region13
    $region12: #{tpu_custom_call.1} parent=1 // pred_region
      %s34 = ssub.s32 5632, 5632
      %35 = vsyncadd [#allocation6], %s34
      %s36 = sshll.u32 [#allocation7], 4
      %s37 = int_to_ptr.vmem [resolvable:$true] %s36
      %42 = dma.hbm_to_vmem [thread:$0]  %s2, 5632, %s37, [#allocation6], 128, 128, 8
    $region13: #{tpu_custom_call.1} parent=1 // pred_fallthru
      _
    // Predicated region
    $region14: #{tpu_custom_call.1} parent=1 // pred_check
      _
    $region15: #{tpu_custom_call.1} parent=1 // pred_check_branch
      %44 = sbr.rel (0) target = $region17
    $region16: #{tpu_custom_call.1} parent=1 // pred_region
      %45 = dma.done [#allocation3], 128
    $region17: #{tpu_custom_call.1} parent=1 // pred_fallthru
      _
    // Predicated region
    $region18: #{tpu_custom_call.1} parent=1 // pred_check
      _
    $region19: #{tpu_custom_call.1} parent=1 // pred_check_branch
      %47 = sbr.rel (0) target = $region21
    $region20: #{tpu_custom_call.1} parent=1 // pred_region
      %48 = dma.done [#allocation6], 128
    $region21: #{tpu_custom_call.1} parent=1 // pred_fallthru
      _
    // Predicated region
    $region22: #{tpu_custom_call.1} parent=1 // pred_check
      _
    $region23: #{tpu_custom_call.1} parent=1 // pred_check_branch
      %50 = sbr.rel (0) target = $region25
    $region24: #{tpu_custom_call.1} parent=1 // pred_region
      %51 = dma.done [#allocation6], 5632
    $region25: #{tpu_custom_call.1} parent=1 // pred_fallthru
      _
    %v52 = vld [vmem:[#allocation5] sm:$0xff]
    %v53 = vld [vmem:[#allocation7] sm:$0xff]
    %v54 = vld [vmem:[#allocation7 + $0x8] sm:$0xff]
    %v55 = vld [vmem:[#allocation7 + $0x150] sm:$0x1]
    %v56 = vlaneseq
    %v57 = vshrl.u32 %v56, 7
    %v58 = vsub.s32 0, %v57
    %v59 = vrot.slane %v55, %v58
    %vm60 = vcmask 130048
    %v62 = vsel %vm60, %v52, 0
    %64 = vmatprep.subr.mxu0 0.0
    %65 = vmatpush1.msra.mxu0 %v53
    %66 = vmatprep.subr.mxu0 0.0
    %67 = vmatpush1.msra.mxu0 %v54
    %68 = vmatprep.subr.mxu0 0.0
    %69 = vmatpush1.msra.mxu0 0.0
    %70 = vmatprep.subr.mxu0 0.0
    %71 = vmatpush1.msra.mxu0 0.0
    %72 = vmatprep.subr.mxu0 0.0
    %73 = vmatpush1.msra.mxu0 0.0
    %74 = vmatprep.subr.mxu0 0.0
    %75 = vmatpush1.msra.mxu0 0.0
    %76 = vmatprep.subr.mxu0 0.0
    %77 = vmatpush1.msra.mxu0 0.0
    %78 = vmatprep.subr.mxu0 0.0
    %79 = vmatpush1.msra.mxu0 0.0
    %80 = vmatprep.subr.mxu0 0.0
    %81 = vmatpush1.msra.mxu0 0.0
    %82 = vmatprep.subr.mxu0 0.0
    %83 = vmatpush1.msra.mxu0 0.0
    %84 = vmatprep.subr.mxu0 0.0
    %85 = vmatpush1.msra.mxu0 0.0
    %86 = vmatprep.subr.mxu0 0.0
    %87 = vmatpush1.msra.mxu0 0.0
    %88 = vmatprep.subr.mxu0 0.0
    %89 = vmatpush1.msra.mxu0 0.0
    %90 = vmatprep.subr.mxu0 0.0
    %91 = vmatpush1.msra.mxu0 0.0
    %92 = vmatprep.subr.mxu0 0.0
    %93 = vmatpush1.msra.mxu0 0.0
    %94 = vmatprep.subr.mxu0 0.0
    %95 = vmatpush1.msra.mxu0 0.0
    %96 = vmatprep.subr.mxu0 0.0
    %97 = vmatpush1.msra.mxu0 0.0
    %98 = vmatprep.subr.mxu0 0.0
    %99 = vmatpush1.msra.mxu0 0.0
    %100 = vmatprep.subr.mxu0 0.0
    %101 = vmatpush1.msra.mxu0 0.0
    %102 = vmatprep.subr.mxu0 0.0
    %103 = vmatpush1.msra.mxu0 0.0
    %104 = vmatprep.subr.mxu0 0.0
    %105 = vmatpush1.msra.mxu0 0.0
    %106 = vmatprep.subr.mxu0 0.0
    %107 = vmatpush1.msra.mxu0 0.0
    %108 = vmatprep.subr.mxu0 0.0
    %109 = vmatpush1.msra.mxu0 0.0
    %110 = vmatprep.subr.mxu0 0.0
    %111 = vmatpush1.msra.mxu0 0.0
    %112 = vmatprep.subr.mxu0 0.0
    %113 = vmatpush1.msra.mxu0 0.0
    %114 = vmatprep.subr.mxu0 0.0
    %115 = vmatpush1.msra.mxu0 0.0
    %116 = vmatprep.subr.mxu0 0.0
    %117 = vmatpush1.msra.mxu0 0.0
    %118 = vmatprep.subr.mxu0 0.0
    %119 = vmatpush1.msra.mxu0 0.0
    %120 = vmatprep.subr.mxu0 0.0
    %121 = vmatpush1.msra.mxu0 0.0
    %122 = vmatprep.subr.mxu0 0.0
    %123 = vmatpush1.msra.mxu0 0.0
    %124 = vmatprep.subr.mxu0 0.0
    %125 = vmatpush1.msra.mxu0 0.0
    %126 = vmatprep.subr.mxu0 0.0
    %127 = vmatpush1.msra.mxu0 0.0
    %128 = vmatprep.mubr.f32.mxu0 0.0
    %129 = vmatmul.mubr.f32.gmra.mrb[0].mxu0 %v62
    %v130 = vpop.f32.mrb[0].mxu0
    %v131 = vadd.f32 %v59, %v130
    %v132 = vpop.f32.mrb[0].mxu0
    %133 = vdwg.mxu0
    %v134 = vmax.f32 %v131, 0.0
    %v135 = vld [vmem:[#allocation7 + $0x10] sm:$0xff]
    %v136 = vld [vmem:[#allocation7 + $0x18] sm:$0xff]
    %v137 = vld [vmem:[#allocation7 + $0x20] sm:$0xff]
    %v138 = vld [vmem:[#allocation7 + $0x28] sm:$0xff]
    %v139 = vld [vmem:[#allocation7 + $0x30] sm:$0xff]
    %v140 = vld [vmem:[#allocation7 + $0x38] sm:$0xff]
    %v141 = vld [vmem:[#allocation7 + $0x40] sm:$0xff]
    %v142 = vld [vmem:[#allocation7 + $0x48] sm:$0xff]
    %v143 = vld [vmem:[#allocation7 + $0x50] sm:$0xff]
    %v144 = vld [vmem:[#allocation7 + $0x58] sm:$0xff]
    %v145 = vld [vmem:[#allocation7 + $0x60] sm:$0xff]
    %v146 = vld [vmem:[#allocation7 + $0x68] sm:$0xff]
    %v147 = vld [vmem:[#allocation7 + $0x70] sm:$0xff]
    %v148 = vld [vmem:[#allocation7 + $0x78] sm:$0xff]
    %v149 = vld [vmem:[#allocation7 + $0x80] sm:$0xff]
    %v150 = vld [vmem:[#allocation7 + $0x88] sm:$0xff]
    %v151 = vld [vmem:[#allocation7 + $0x151] sm:$0x1]
    %v152 = vlaneseq
    %v153 = vshrl.u32 %v152, 7
    %v154 = vsub.s32 0, %v153
    %v155 = vrot.slane %v151, %v154
    %156 = vmatprep.subr.mxu0 0.0
    %157 = vmatpush1.msra.mxu0 %v135
    %158 = vmatprep.subr.mxu0 0.0
    %159 = vmatpush1.msra.mxu0 %v136
    %160 = vmatprep.subr.mxu0 0.0
    %161 = vmatpush1.msra.mxu0 %v137
    %162 = vmatprep.subr.mxu0 0.0
    %163 = vmatpush1.msra.mxu0 %v138
    %164 = vmatprep.subr.mxu0 0.0
    %165 = vmatpush1.msra.mxu0 %v139
    %166 = vmatprep.subr.mxu0 0.0
    %167 = vmatpush1.msra.mxu0 %v140
    %168 = vmatprep.subr.mxu0 0.0
    %169 = vmatpush1.msra.mxu0 %v141
    %170 = vmatprep.subr.mxu0 0.0
    %171 = vmatpush1.msra.mxu0 %v142
    %172 = vmatprep.subr.mxu0 0.0
    %173 = vmatpush1.msra.mxu0 %v143
    %174 = vmatprep.subr.mxu0 0.0
    %175 = vmatpush1.msra.mxu0 %v144
    %176 = vmatprep.subr.mxu0 0.0
    %177 = vmatpush1.msra.mxu0 %v145
    %178 = vmatprep.subr.mxu0 0.0
    %179 = vmatpush1.msra.mxu0 %v146
    %180 = vmatprep.subr.mxu0 0.0
    %181 = vmatpush1.msra.mxu0 %v147
    %182 = vmatprep.subr.mxu0 0.0
    %183 = vmatpush1.msra.mxu0 %v148
    %184 = vmatprep.subr.mxu0 0.0
    %185 = vmatpush1.msra.mxu0 %v149
    %186 = vmatprep.subr.mxu0 0.0
    %187 = vmatpush1.msra.mxu0 %v150
    %188 = vmatprep.subr.mxu0 0.0
    %189 = vmatpush1.msra.mxu0 0.0
    %190 = vmatprep.subr.mxu0 0.0
    %191 = vmatpush1.msra.mxu0 0.0
    %192 = vmatprep.subr.mxu0 0.0
    %193 = vmatpush1.msra.mxu0 0.0
    %194 = vmatprep.subr.mxu0 0.0
    %195 = vmatpush1.msra.mxu0 0.0
    %196 = vmatprep.subr.mxu0 0.0
    %197 = vmatpush1.msra.mxu0 0.0
    %198 = vmatprep.subr.mxu0 0.0
    %199 = vmatpush1.msra.mxu0 0.0
    %200 = vmatprep.subr.mxu0 0.0
    %201 = vmatpush1.msra.mxu0 0.0
    %202 = vmatprep.subr.mxu0 0.0
    %203 = vmatpush1.msra.mxu0 0.0
    %204 = vmatprep.subr.mxu0 0.0
    %205 = vmatpush1.msra.mxu0 0.0
    %206 = vmatprep.subr.mxu0 0.0
    %207 = vmatpush1.msra.mxu0 0.0
    %208 = vmatprep.subr.mxu0 0.0
    %209 = vmatpush1.msra.mxu0 0.0
    %210 = vmatprep.subr.mxu0 0.0
    %211 = vmatpush1.msra.mxu0 0.0
    %212 = vmatprep.subr.mxu0 0.0
    %213 = vmatpush1.msra.mxu0 0.0
    %214 = vmatprep.subr.mxu0 0.0
    %215 = vmatpush1.msra.mxu0 0.0
    %216 = vmatprep.subr.mxu0 0.0
    %217 = vmatpush1.msra.mxu0 0.0
    %218 = vmatprep.subr.mxu0 0.0
    %219 = vmatpush1.msra.mxu0 0.0
    %220 = vmatprep.mubr.f32.mxu0 0.0
    %221 = vmatmul.mubr.f32.gmra.mrb[0].mxu0 %v134
    %v222 = vpop.f32.mrb[0].mxu0
    %v223 = vadd.f32 %v155, %v222
    %v224 = vpop.f32.mrb[0].mxu0
    %225 = vdwg.mxu0
    %v226 = vmax.f32 %v223, 0.0
    %v227 = vld [vmem:[#allocation7 + $0x90] sm:$0xff]
    %v228 = vld [vmem:[#allocation7 + $0x98] sm:$0xff]
    %v229 = vld [vmem:[#allocation7 + $0xa0] sm:$0xff]
    %v230 = vld [vmem:[#allocation7 + $0xa8] sm:$0xff]
    %v231 = vld [vmem:[#allocation7 + $0xb0] sm:$0xff]
    %v232 = vld [vmem:[#allocation7 + $0xb8] sm:$0xff]
    %v233 = vld [vmem:[#allocation7 + $0xc0] sm:$0xff]
    %v234 = vld [vmem:[#allocation7 + $0xc8] sm:$0xff]
    %v235 = vld [vmem:[#allocation7 + $0xd0] sm:$0xff]
    %v236 = vld [vmem:[#allocation7 + $0xd8] sm:$0xff]
    %v237 = vld [vmem:[#allocation7 + $0xe0] sm:$0xff]
    %v238 = vld [vmem:[#allocation7 + $0xe8] sm:$0xff]
    %v239 = vld [vmem:[#allocation7 + $0xf0] sm:$0xff]
    %v240 = vld [vmem:[#allocation7 + $0xf8] sm:$0xff]
    %v241 = vld [vmem:[#allocation7 + $0x100] sm:$0xff]
    %v242 = vld [vmem:[#allocation7 + $0x108] sm:$0xff]
    %v243 = vld [vmem:[#allocation7 + $0x152] sm:$0x1]
    %v244 = vlaneseq
    %v245 = vshrl.u32 %v244, 7
    %v246 = vsub.s32 0, %v245
    %v247 = vrot.slane %v243, %v246
    %248 = vmatprep.subr.mxu0 0.0
    %249 = vmatpush1.msra.mxu0 %v227
    %250 = vmatprep.subr.mxu0 0.0
    %251 = vmatpush1.msra.mxu0 %v228
    %252 = vmatprep.subr.mxu0 0.0
    %253 = vmatpush1.msra.mxu0 %v229
    %254 = vmatprep.subr.mxu0 0.0
    %255 = vmatpush1.msra.mxu0 %v230
    %256 = vmatprep.subr.mxu0 0.0
    %257 = vmatpush1.msra.mxu0 %v231
    %258 = vmatprep.subr.mxu0 0.0
    %259 = vmatpush1.msra.mxu0 %v232
    %260 = vmatprep.subr.mxu0 0.0
    %261 = vmatpush1.msra.mxu0 %v233
    %262 = vmatprep.subr.mxu0 0.0
    %263 = vmatpush1.msra.mxu0 %v234
    %264 = vmatprep.subr.mxu0 0.0
    %265 = vmatpush1.msra.mxu0 %v235
    %266 = vmatprep.subr.mxu0 0.0
    %267 = vmatpush1.msra.mxu0 %v236
    %268 = vmatprep.subr.mxu0 0.0
    %269 = vmatpush1.msra.mxu0 %v237
    %270 = vmatprep.subr.mxu0 0.0
    %271 = vmatpush1.msra.mxu0 %v238
    %272 = vmatprep.subr.mxu0 0.0
    %273 = vmatpush1.msra.mxu0 %v239
    %274 = vmatprep.subr.mxu0 0.0
    %275 = vmatpush1.msra.mxu0 %v240
    %276 = vmatprep.subr.mxu0 0.0
    %277 = vmatpush1.msra.mxu0 %v241
    %278 = vmatprep.subr.mxu0 0.0
    %279 = vmatpush1.msra.mxu0 %v242
    %280 = vmatprep.subr.mxu0 0.0
    %281 = vmatpush1.msra.mxu0 0.0
    %282 = vmatprep.subr.mxu0 0.0
    %283 = vmatpush1.msra.mxu0 0.0
    %284 = vmatprep.subr.mxu0 0.0
    %285 = vmatpush1.msra.mxu0 0.0
    %286 = vmatprep.subr.mxu0 0.0
    %287 = vmatpush1.msra.mxu0 0.0
    %288 = vmatprep.subr.mxu0 0.0
    %289 = vmatpush1.msra.mxu0 0.0
    %290 = vmatprep.subr.mxu0 0.0
    %291 = vmatpush1.msra.mxu0 0.0
    %292 = vmatprep.subr.mxu0 0.0
    %293 = vmatpush1.msra.mxu0 0.0
    %294 = vmatprep.subr.mxu0 0.0
    %295 = vmatpush1.msra.mxu0 0.0
    %296 = vmatprep.subr.mxu0 0.0
    %297 = vmatpush1.msra.mxu0 0.0
    %298 = vmatprep.subr.mxu0 0.0
    %299 = vmatpush1.msra.mxu0 0.0
    %300 = vmatprep.subr.mxu0 0.0
    %301 = vmatpush1.msra.mxu0 0.0
    %302 = vmatprep.subr.mxu0 0.0
    %303 = vmatpush1.msra.mxu0 0.0
    %304 = vmatprep.subr.mxu0 0.0
    %305 = vmatpush1.msra.mxu0 0.0
    %306 = vmatprep.subr.mxu0 0.0
    %307 = vmatpush1.msra.mxu0 0.0
    %308 = vmatprep.subr.mxu0 0.0
    %309 = vmatpush1.msra.mxu0 0.0
    %310 = vmatprep.subr.mxu0 0.0
    %311 = vmatpush1.msra.mxu0 0.0
    %312 = vmatprep.mubr.f32.mxu0 0.0
    %313 = vmatmul.mubr.f32.gmra.mrb[0].mxu0 %v226
    %v314 = vpop.f32.mrb[0].mxu0
    %v315 = vadd.f32 %v247, %v314
    %v316 = vpop.f32.mrb[0].mxu0
    %317 = vdwg.mxu0
    %v318 = vld [vmem:[#allocation7 + $0x110] sm:$0xff]
    %v319 = vld [vmem:[#allocation7 + $0x118] sm:$0xff]
    %v320 = vld [vmem:[#allocation7 + $0x153] sm:$0x1]
    %v321 = vlaneseq
    %v322 = vshrl.u32 %v321, 7
    %v323 = vsub.s32 0, %v322
    %v324 = vrot.slane %v320, %v323
    %v326 = vsel %vm60, %v315, 0
    %328 = vmatprep.subr.mxu0 0.0
    %329 = vmatpush1.msra.mxu0 %v318
    %330 = vmatprep.subr.mxu0 0.0
    %331 = vmatpush1.msra.mxu0 %v319
    %332 = vmatprep.subr.mxu0 0.0
    %333 = vmatpush1.msra.mxu0 0.0
    %334 = vmatprep.subr.mxu0 0.0
    %335 = vmatpush1.msra.mxu0 0.0
    %336 = vmatprep.subr.mxu0 0.0
    %337 = vmatpush1.msra.mxu0 0.0
    %338 = vmatprep.subr.mxu0 0.0
    %339 = vmatpush1.msra.mxu0 0.0
    %340 = vmatprep.subr.mxu0 0.0
    %341 = vmatpush1.msra.mxu0 0.0
    %342 = vmatprep.subr.mxu0 0.0
    %343 = vmatpush1.msra.mxu0 0.0
    %344 = vmatprep.subr.mxu0 0.0
    %345 = vmatpush1.msra.mxu0 0.0
    %346 = vmatprep.subr.mxu0 0.0
    %347 = vmatpush1.msra.mxu0 0.0
    %348 = vmatprep.subr.mxu0 0.0
    %349 = vmatpush1.msra.mxu0 0.0
    %350 = vmatprep.subr.mxu0 0.0
    %351 = vmatpush1.msra.mxu0 0.0
    %352 = vmatprep.subr.mxu0 0.0
    %353 = vmatpush1.msra.mxu0 0.0
    %354 = vmatprep.subr.mxu0 0.0
    %355 = vmatpush1.msra.mxu0 0.0
    %356 = vmatprep.subr.mxu0 0.0
    %357 = vmatpush1.msra.mxu0 0.0
    %358 = vmatprep.subr.mxu0 0.0
    %359 = vmatpush1.msra.mxu0 0.0
    %360 = vmatprep.subr.mxu0 0.0
    %361 = vmatpush1.msra.mxu0 0.0
    %362 = vmatprep.subr.mxu0 0.0
    %363 = vmatpush1.msra.mxu0 0.0
    %364 = vmatprep.subr.mxu0 0.0
    %365 = vmatpush1.msra.mxu0 0.0
    %366 = vmatprep.subr.mxu0 0.0
    %367 = vmatpush1.msra.mxu0 0.0
    %368 = vmatprep.subr.mxu0 0.0
    %369 = vmatpush1.msra.mxu0 0.0
    %370 = vmatprep.subr.mxu0 0.0
    %371 = vmatpush1.msra.mxu0 0.0
    %372 = vmatprep.subr.mxu0 0.0
    %373 = vmatpush1.msra.mxu0 0.0
    %374 = vmatprep.subr.mxu0 0.0
    %375 = vmatpush1.msra.mxu0 0.0
    %376 = vmatprep.subr.mxu0 0.0
    %377 = vmatpush1.msra.mxu0 0.0
    %378 = vmatprep.subr.mxu0 0.0
    %379 = vmatpush1.msra.mxu0 0.0
    %380 = vmatprep.subr.mxu0 0.0
    %381 = vmatpush1.msra.mxu0 0.0
    %382 = vmatprep.subr.mxu0 0.0
    %383 = vmatpush1.msra.mxu0 0.0
    %384 = vmatprep.subr.mxu0 0.0
    %385 = vmatpush1.msra.mxu0 0.0
    %386 = vmatprep.subr.mxu0 0.0
    %387 = vmatpush1.msra.mxu0 0.0
    %388 = vmatprep.subr.mxu0 0.0
    %389 = vmatpush1.msra.mxu0 0.0
    %390 = vmatprep.subr.mxu0 0.0
    %391 = vmatpush1.msra.mxu0 0.0
    %392 = vmatprep.mubr.f32.mxu0 0.0
    %393 = vmatmul.mubr.f32.gmra.mrb[0].mxu0 %v326
    %v394 = vpop.f32.mrb[0].mxu0
    %v395 = vadd.f32 %v324, %v394
    %v396 = vpop.f32.mrb[0].mxu0
    %397 = vdwg.mxu0
    %v398 = vld [vmem:[#allocation2] sm:$0xff]
    %v399 = vld [vmem:[#allocation7 + $0x156] sm:$0x1]
    %v400 = vld [vmem:[#allocation7 + $0x158] sm:$0x1]
    %v401 = vld [vmem:[#allocation7 + $0x120] sm:$0xff]
    %v402 = vld [vmem:[#allocation7 + $0x130] sm:$0xff]
    %v403 = vld [vmem:[#allocation7 + $0x138] sm:$0xff]
    %v404 = vld [vmem:[#allocation7 + $0x154] sm:$0x1]
    %v405 = vlaneseq
    %v406 = vshrl.u32 %v405, 7
    %v407 = vsub.s32 0, %v406
    %v408 = vrot.slane %v399, %v407
    %v409 = vmul.f32 %v408, %v398
    %vm410 = vcmask 64512
    %v412 = vsel %vm410, %v409, 0
    %414 = vmatprep.subr.mxu0 0.0
    %415 = vmatpush1.msra.mxu0 %v401
    %416 = vmatprep.subr.mxu0 0.0
    %417 = vmatpush1.msra.mxu0 0.0
    %418 = vmatprep.subr.mxu0 0.0
    %419 = vmatpush1.msra.mxu0 0.0
    %420 = vmatprep.subr.mxu0 0.0
    %421 = vmatpush1.msra.mxu0 0.0
    %422 = vmatprep.subr.mxu0 0.0
    %423 = vmatpush1.msra.mxu0 0.0
    %424 = vmatprep.subr.mxu0 0.0
    %425 = vmatpush1.msra.mxu0 0.0
    %426 = vmatprep.subr.mxu0 0.0
    %427 = vmatpush1.msra.mxu0 0.0
    %428 = vmatprep.subr.mxu0 0.0
    %429 = vmatpush1.msra.mxu0 0.0
    %430 = vmatprep.subr.mxu0 0.0
    %431 = vmatpush1.msra.mxu0 0.0
    %432 = vmatprep.subr.mxu0 0.0
    %433 = vmatpush1.msra.mxu0 0.0
    %434 = vmatprep.subr.mxu0 0.0
    %435 = vmatpush1.msra.mxu0 0.0
    %436 = vmatprep.subr.mxu0 0.0
    %437 = vmatpush1.msra.mxu0 0.0
    %438 = vmatprep.subr.mxu0 0.0
    %439 = vmatpush1.msra.mxu0 0.0
    %440 = vmatprep.subr.mxu0 0.0
    %441 = vmatpush1.msra.mxu0 0.0
    %442 = vmatprep.subr.mxu0 0.0
    %443 = vmatpush1.msra.mxu0 0.0
    %444 = vmatprep.subr.mxu0 0.0
    %445 = vmatpush1.msra.mxu0 0.0
    %446 = vmatprep.subr.mxu0 0.0
    %447 = vmatpush1.msra.mxu0 0.0
    %448 = vmatprep.subr.mxu0 0.0
    %449 = vmatpush1.msra.mxu0 0.0
    %450 = vmatprep.subr.mxu0 0.0
    %451 = vmatpush1.msra.mxu0 0.0
    %452 = vmatprep.subr.mxu0 0.0
    %453 = vmatpush1.msra.mxu0 0.0
    %454 = vmatprep.subr.mxu0 0.0
    %455 = vmatpush1.msra.mxu0 0.0
    %456 = vmatprep.subr.mxu0 0.0
    %457 = vmatpush1.msra.mxu0 0.0
    %458 = vmatprep.subr.mxu0 0.0
    %459 = vmatpush1.msra.mxu0 0.0
    %460 = vmatprep.subr.mxu0 0.0
    %461 = vmatpush1.msra.mxu0 0.0
    %462 = vmatprep.subr.mxu0 0.0
    %463 = vmatpush1.msra.mxu0 0.0
    %464 = vmatprep.subr.mxu0 0.0
    %465 = vmatpush1.msra.mxu0 0.0
    %466 = vmatprep.subr.mxu0 0.0
    %467 = vmatpush1.msra.mxu0 0.0
    %468 = vmatprep.subr.mxu0 0.0
    %469 = vmatpush1.msra.mxu0 0.0
    %470 = vmatprep.subr.mxu0 0.0
    %471 = vmatpush1.msra.mxu0 0.0
    %472 = vmatprep.subr.mxu0 0.0
    %473 = vmatpush1.msra.mxu0 0.0
    %474 = vmatprep.subr.mxu0 0.0
    %475 = vmatpush1.msra.mxu0 0.0
    %476 = vmatprep.subr.mxu0 0.0
    %477 = vmatpush1.msra.mxu0 0.0
    %478 = vmatprep.mubr.f32.mxu0 0.0
    %479 = vmatmul.mubr.f32.gmra.mrb[0].mxu0 %v412
    %v480 = vpop.f32.mrb[0].mxu0
    %v481 = vadd.f32 %v395, %v480
    %v482 = vpop.f32.mrb[0].mxu0
    %483 = vdwg.mxu0
    %v484 = vmax.f32 %v481, 0.0
    %v485 = vlaneseq
    %v486 = vshrl.u32 %v485, 7
    %v487 = vsub.s32 0, %v486
    %v488 = vrot.slane %v404, %v487
    %v490 = vsel %vm60, %v484, 0
    %492 = vmatprep.subr.mxu0 0.0
    %493 = vmatpush1.msra.mxu0 %v402
    %494 = vmatprep.subr.mxu0 0.0
    %495 = vmatpush1.msra.mxu0 %v403
    %496 = vmatprep.subr.mxu0 0.0
    %497 = vmatpush1.msra.mxu0 0.0
    %498 = vmatprep.subr.mxu0 0.0
    %499 = vmatpush1.msra.mxu0 0.0
    %500 = vmatprep.subr.mxu0 0.0
    %501 = vmatpush1.msra.mxu0 0.0
    %502 = vmatprep.subr.mxu0 0.0
    %503 = vmatpush1.msra.mxu0 0.0
    %504 = vmatprep.subr.mxu0 0.0
    %505 = vmatpush1.msra.mxu0 0.0
    %506 = vmatprep.subr.mxu0 0.0
    %507 = vmatpush1.msra.mxu0 0.0
    %508 = vmatprep.subr.mxu0 0.0
    %509 = vmatpush1.msra.mxu0 0.0
    %510 = vmatprep.subr.mxu0 0.0
    %511 = vmatpush1.msra.mxu0 0.0
    %512 = vmatprep.subr.mxu0 0.0
    %513 = vmatpush1.msra.mxu0 0.0
    %514 = vmatprep.subr.mxu0 0.0
    %515 = vmatpush1.msra.mxu0 0.0
    %516 = vmatprep.subr.mxu0 0.0
    %517 = vmatpush1.msra.mxu0 0.0
    %518 = vmatprep.subr.mxu0 0.0
    %519 = vmatpush1.msra.mxu0 0.0
    %520 = vmatprep.subr.mxu0 0.0
    %521 = vmatpush1.msra.mxu0 0.0
    %522 = vmatprep.subr.mxu0 0.0
    %523 = vmatpush1.msra.mxu0 0.0
    %524 = vmatprep.subr.mxu0 0.0
    %525 = vmatpush1.msra.mxu0 0.0
    %526 = vmatprep.subr.mxu0 0.0
    %527 = vmatpush1.msra.mxu0 0.0
    %528 = vmatprep.subr.mxu0 0.0
    %529 = vmatpush1.msra.mxu0 0.0
    %530 = vmatprep.subr.mxu0 0.0
    %531 = vmatpush1.msra.mxu0 0.0
    %532 = vmatprep.subr.mxu0 0.0
    %533 = vmatpush1.msra.mxu0 0.0
    %534 = vmatprep.subr.mxu0 0.0
    %535 = vmatpush1.msra.mxu0 0.0
    %536 = vmatprep.subr.mxu0 0.0
    %537 = vmatpush1.msra.mxu0 0.0
    %538 = vmatprep.subr.mxu0 0.0
    %539 = vmatpush1.msra.mxu0 0.0
    %540 = vmatprep.subr.mxu0 0.0
    %541 = vmatpush1.msra.mxu0 0.0
    %542 = vmatprep.subr.mxu0 0.0
    %543 = vmatpush1.msra.mxu0 0.0
    %544 = vmatprep.subr.mxu0 0.0
    %545 = vmatpush1.msra.mxu0 0.0
    %546 = vmatprep.subr.mxu0 0.0
    %547 = vmatpush1.msra.mxu0 0.0
    %548 = vmatprep.subr.mxu0 0.0
    %549 = vmatpush1.msra.mxu0 0.0
    %550 = vmatprep.subr.mxu0 0.0
    %551 = vmatpush1.msra.mxu0 0.0
    %552 = vmatprep.subr.mxu0 0.0
    %553 = vmatpush1.msra.mxu0 0.0
    %554 = vmatprep.subr.mxu0 0.0
    %555 = vmatpush1.msra.mxu0 0.0
    %556 = vmatprep.mubr.f32.mxu0 0.0
    %557 = vmatmul.mubr.f32.gmra.mrb[0].mxu0 %v490
    %v558 = vpop.f32.mrb[0].mxu0
    %v559 = vadd.f32 %v488, %v558
    %v560 = vpop.f32.mrb[0].mxu0
    %561 = vdwg.mxu0
    %v562 = vtanh.pop %v559
    %v563 = vlaneseq
    %v564 = vshrl.u32 %v563, 7
    %v565 = vsub.s32 0, %v564
    %v566 = vrot.slane %v400, %v565
    %v567 = vmul.f32 %v562, %v566
    %v568 = vsub.f32 1.0, %v399
    %v569 = vlaneseq
    %v570 = vshrl.u32 %v569, 7
    %v571 = vsub.s32 0, %v570
    %v572 = vrot.slane %v568, %v571
    %574 = vrot.lane.b32.xlu0 %v572, 8
    %v575 = vpop.permute.xlu0 %574
    %v577 = vmul.f32 %v559, %v575
    %v578 = vmul.f32 %v572, %v398
    %580 = vrot.lane.b32.xlu0 %v577, 120
    %v581 = vpop.permute.xlu0 %580
    %v583 = vsub.f32 %v578, %v581
    %v584 = vsub.f32 0.0, %v567
    %v585 = vmul.f32 %v584, 1.442695
    %v586 = vpow.pop %v585
    %v587 = vmul.f32 %v583, %v586
    %v588 = vadd.f32 %v409, %v587
    %v589 = vsel %vm410, %v567, 0.0
    %590 = vadd.xlane.f32.xlu0 %v589
    %v591 = vpop.xlane.xlu0 %590
    %v592 = vadd.f32 %v591, 0.0
    %v593 = vld [vmem:[#allocation7 + $0x157] sm:$0x1]
    %v594 = vld [vmem:[#allocation7 + $0x159] sm:$0x1]
    %v595 = vld [vmem:[#allocation7 + $0x128] sm:$0xff]
    %v596 = vld [vmem:[#allocation7 + $0x140] sm:$0xff]
    %v597 = vld [vmem:[#allocation7 + $0x148] sm:$0xff]
    %v598 = vld [vmem:[#allocation7 + $0x155] sm:$0x1]
    %v599 = vlaneseq
    %v600 = vshrl.u32 %v599, 7
    %v601 = vsub.s32 0, %v600
    %v602 = vrot.slane %v593, %v601
    %v603 = vmul.f32 %v602, %v588
    %605 = vrot.lane.b32.xlu0 %v395, 112
    %v606 = vpop.permute.xlu0 %605
    %v609 = vsel %vm410, %v603, 0
    %611 = vmatprep.subr.mxu0 0.0
    %612 = vmatpush1.msra.mxu0 %v595
    %613 = vmatprep.subr.mxu0 0.0
    %614 = vmatpush1.msra.mxu0 0.0
    %615 = vmatprep.subr.mxu0 0.0
    %616 = vmatpush1.msra.mxu0 0.0
    %617 = vmatprep.subr.mxu0 0.0
    %618 = vmatpush1.msra.mxu0 0.0
    %619 = vmatprep.subr.mxu0 0.0
    %620 = vmatpush1.msra.mxu0 0.0
    %621 = vmatprep.subr.mxu0 0.0
    %622 = vmatpush1.msra.mxu0 0.0
    %623 = vmatprep.subr.mxu0 0.0
    %624 = vmatpush1.msra.mxu0 0.0
    %625 = vmatprep.subr.mxu0 0.0
    %626 = vmatpush1.msra.mxu0 0.0
    %627 = vmatprep.subr.mxu0 0.0
    %628 = vmatpush1.msra.mxu0 0.0
    %629 = vmatprep.subr.mxu0 0.0
    %630 = vmatpush1.msra.mxu0 0.0
    %631 = vmatprep.subr.mxu0 0.0
    %632 = vmatpush1.msra.mxu0 0.0
    %633 = vmatprep.subr.mxu0 0.0
    %634 = vmatpush1.msra.mxu0 0.0
    %635 = vmatprep.subr.mxu0 0.0
    %636 = vmatpush1.msra.mxu0 0.0
    %637 = vmatprep.subr.mxu0 0.0
    %638 = vmatpush1.msra.mxu0 0.0
    %639 = vmatprep.subr.mxu0 0.0
    %640 = vmatpush1.msra.mxu0 0.0
    %641 = vmatprep.subr.mxu0 0.0
    %642 = vmatpush1.msra.mxu0 0.0
    %643 = vmatprep.subr.mxu0 0.0
    %644 = vmatpush1.msra.mxu0 0.0
    %645 = vmatprep.subr.mxu0 0.0
    %646 = vmatpush1.msra.mxu0 0.0
    %647 = vmatprep.subr.mxu0 0.0
    %648 = vmatpush1.msra.mxu0 0.0
    %649 = vmatprep.subr.mxu0 0.0
    %650 = vmatpush1.msra.mxu0 0.0
    %651 = vmatprep.subr.mxu0 0.0
    %652 = vmatpush1.msra.mxu0 0.0
    %653 = vmatprep.subr.mxu0 0.0
    %654 = vmatpush1.msra.mxu0 0.0
    %655 = vmatprep.subr.mxu0 0.0
    %656 = vmatpush1.msra.mxu0 0.0
    %657 = vmatprep.subr.mxu0 0.0
    %658 = vmatpush1.msra.mxu0 0.0
    %659 = vmatprep.subr.mxu0 0.0
    %660 = vmatpush1.msra.mxu0 0.0
    %661 = vmatprep.subr.mxu0 0.0
    %662 = vmatpush1.msra.mxu0 0.0
    %663 = vmatprep.subr.mxu0 0.0
    %664 = vmatpush1.msra.mxu0 0.0
    %665 = vmatprep.subr.mxu0 0.0
    %666 = vmatpush1.msra.mxu0 0.0
    %667 = vmatprep.subr.mxu0 0.0
    %668 = vmatpush1.msra.mxu0 0.0
    %669 = vmatprep.subr.mxu0 0.0
    %670 = vmatpush1.msra.mxu0 0.0
    %671 = vmatprep.subr.mxu0 0.0
    %672 = vmatpush1.msra.mxu0 0.0
    %673 = vmatprep.subr.mxu0 0.0
    %674 = vmatpush1.msra.mxu0 0.0
    %675 = vmatprep.mubr.f32.mxu0 0.0
    %676 = vmatmul.mubr.f32.gmra.mrb[0].mxu0 %v609
    %v677 = vpop.f32.mrb[0].mxu0
    %v678 = vadd.f32 %v606, %v677
    %v679 = vpop.f32.mrb[0].mxu0
    %680 = vdwg.mxu0
    %v681 = vmax.f32 %v678, 0.0
    %v682 = vlaneseq
    %v683 = vshrl.u32 %v682, 7
    %v684 = vsub.s32 0, %v683
    %v685 = vrot.slane %v598, %v684
    %v687 = vsel %vm60, %v681, 0
    %689 = vmatprep.subr.mxu0 0.0
    %690 = vmatpush1.msra.mxu0 %v596
    %691 = vmatprep.subr.mxu0 0.0
    %692 = vmatpush1.msra.mxu0 %v597
    %693 = vmatprep.subr.mxu0 0.0
    %694 = vmatpush1.msra.mxu0 0.0
    %695 = vmatprep.subr.mxu0 0.0
    %696 = vmatpush1.msra.mxu0 0.0
    %697 = vmatprep.subr.mxu0 0.0
    %698 = vmatpush1.msra.mxu0 0.0
    %699 = vmatprep.subr.mxu0 0.0
    %700 = vmatpush1.msra.mxu0 0.0
    %701 = vmatprep.subr.mxu0 0.0
    %702 = vmatpush1.msra.mxu0 0.0
    %703 = vmatprep.subr.mxu0 0.0
    %704 = vmatpush1.msra.mxu0 0.0
    %705 = vmatprep.subr.mxu0 0.0
    %706 = vmatpush1.msra.mxu0 0.0
    %707 = vmatprep.subr.mxu0 0.0
    %708 = vmatpush1.msra.mxu0 0.0
    %709 = vmatprep.subr.mxu0 0.0
    %710 = vmatpush1.msra.mxu0 0.0
    %711 = vmatprep.subr.mxu0 0.0
    %712 = vmatpush1.msra.mxu0 0.0
    %713 = vmatprep.subr.mxu0 0.0
    %714 = vmatpush1.msra.mxu0 0.0
    %715 = vmatprep.subr.mxu0 0.0
    %716 = vmatpush1.msra.mxu0 0.0
    %717 = vmatprep.subr.mxu0 0.0
    %718 = vmatpush1.msra.mxu0 0.0
    %719 = vmatprep.subr.mxu0 0.0
    %720 = vmatpush1.msra.mxu0 0.0
    %721 = vmatprep.subr.mxu0 0.0
    %722 = vmatpush1.msra.mxu0 0.0
    %723 = vmatprep.subr.mxu0 0.0
    %724 = vmatpush1.msra.mxu0 0.0
    %725 = vmatprep.subr.mxu0 0.0
    %726 = vmatpush1.msra.mxu0 0.0
    %727 = vmatprep.subr.mxu0 0.0
    %728 = vmatpush1.msra.mxu0 0.0
    %729 = vmatprep.subr.mxu0 0.0
    %730 = vmatpush1.msra.mxu0 0.0
    %731 = vmatprep.subr.mxu0 0.0
    %732 = vmatpush1.msra.mxu0 0.0
    %733 = vmatprep.subr.mxu0 0.0
    %734 = vmatpush1.msra.mxu0 0.0
    %735 = vmatprep.subr.mxu0 0.0
    %736 = vmatpush1.msra.mxu0 0.0
    %737 = vmatprep.subr.mxu0 0.0
    %738 = vmatpush1.msra.mxu0 0.0
    %739 = vmatprep.subr.mxu0 0.0
    %740 = vmatpush1.msra.mxu0 0.0
    %741 = vmatprep.subr.mxu0 0.0
    %742 = vmatpush1.msra.mxu0 0.0
    %743 = vmatprep.subr.mxu0 0.0
    %744 = vmatpush1.msra.mxu0 0.0
    %745 = vmatprep.subr.mxu0 0.0
    %746 = vmatpush1.msra.mxu0 0.0
    %747 = vmatprep.subr.mxu0 0.0
    %748 = vmatpush1.msra.mxu0 0.0
    %749 = vmatprep.subr.mxu0 0.0
    %750 = vmatpush1.msra.mxu0 0.0
    %751 = vmatprep.subr.mxu0 0.0
    %752 = vmatpush1.msra.mxu0 0.0
    %753 = vmatprep.mubr.f32.mxu0 0.0
    %754 = vmatmul.mubr.f32.gmra.mrb[0].mxu0 %v687
    %v755 = vpop.f32.mrb[0].mxu0
    %v756 = vadd.f32 %v685, %v755
    %v757 = vpop.f32.mrb[0].mxu0
    %758 = vdwg.mxu0
    %v759 = vtanh.pop %v756
    %v760 = vlaneseq
    %v761 = vshrl.u32 %v760, 7
    %v762 = vsub.s32 0, %v761
    %v763 = vrot.slane %v594, %v762
    %v764 = vmul.f32 %v759, %v763
    %v765 = vsub.f32 1.0, %v593
    %v766 = vlaneseq
    %v767 = vshrl.u32 %v766, 7
    %v768 = vsub.s32 0, %v767
    %v769 = vrot.slane %v765, %v768
    %771 = vrot.lane.b32.xlu0 %v769, 8
    %v772 = vpop.permute.xlu0 %771
    %v774 = vmul.f32 %v756, %v772
    %v775 = vmul.f32 %v769, %v588
    %777 = vrot.lane.b32.xlu0 %v774, 120
    %v778 = vpop.permute.xlu0 %777
    %v780 = vsub.f32 %v775, %v778
    %v781 = vsub.f32 0.0, %v764
    %v782 = vmul.f32 %v781, 1.442695
    %v783 = vpow.pop %v782
    %v784 = vmul.f32 %v780, %v783
    %v785 = vadd.f32 %v603, %v784
    %v786 = vsel %vm410, %v764, 0.0
    %787 = vadd.xlane.f32.xlu0 %v786
    %v788 = vpop.xlane.xlu0 %787
    %v789 = vadd.f32 %v592, %v788
    %v790 = vld [vmem:[#allocation7 + $0x15a] sm:$0x1]
    %v791 = vld [vmem:[#allocation7 + $0x15b] sm:$0x1]
    %v792 = vtanh.pop %v785
    %v793 = vlaneseq
    %v794 = vshrl.u32 %v793, 7
    %v795 = vsub.s32 0, %v794
    %v796 = vrot.slane %v791, %v795
    %v797 = vmul.f32 %v796, %v792
    %v798 = vlaneseq
    %v799 = vshrl.u32 %v798, 7
    %v800 = vsub.s32 0, %v799
    %v801 = vrot.slane %v790, %v800
    %v802 = vadd.f32 %v801, %v797
    %v803 = vmul.f32 %v792, %v792
    %v804 = vsub.f32 1.0, %v803
    %v805 = vmul.f32 %v796, %v804
    %v806 = vadd.f32 %v805, 1e-05
    %v807 = vlog2.pop %v806
    %v808 = vmul.f32 %v807, 0.6931472
    %v809 = vsel %vm410, %v808, 0.0
    %810 = vadd.xlane.f32.xlu0 %v809
    %v811 = vpop.xlane.xlu0 %810
    %v812 = vsub.f32 %v789, %v811
    %v813 = vsel %vm410, %v802, %v812
    %814 = vst.msk [vmem:[#allocation8] sm:$0xff] %vm60, %v813
    // Predicated region
    $region26: #{tpu_custom_call.1} parent=1 // pred_check
      _
    $region27: #{tpu_custom_call.1} parent=1 // pred_check_branch
      %816 = sbr.rel (0) target = $region29
    $region28: #{tpu_custom_call.1} parent=1 // pred_region
      %s818 = ssub.s32 128, 128
      %819 = vsyncadd [#allocation4], %s818
      %s821 = sshll.u32 [#allocation8], 4
      %s822 = int_to_ptr.vmem [resolvable:$true] %s821
      %824 = dma.vmem_to_hbm [thread:$0]  %s822, 128, %s3, [#allocation4]
    $region29: #{tpu_custom_call.1} parent=1 // pred_fallthru
      _
    // Predicated region
    $region30: #{tpu_custom_call.1} parent=1 // pred_check
      _
    $region31: #{tpu_custom_call.1} parent=1 // pred_check_branch
      %826 = sbr.rel (0) target = $region33
    $region32: #{tpu_custom_call.1} parent=1 // pred_region
      %827 = dma.done [#allocation4], 128
    $region33: #{tpu_custom_call.1} parent=1 // pred_fallthru
      _
    %828 = vsyncpa [#allocation3], 1
    %829 = vsyncpa [#allocation6], 1
    %830 = vsyncpa [#allocation4], 1

</llo_original>
